<compile_context>
chip_gen: v7x
topology: tpu7x:2x2x1
jax: 0.10.0
libtpu: 0.0.40
codegen_flags: <defaults>
</compile_context>

<pallas_src>
import jax
import jax.numpy as jnp
from jax.experimental import pallas as pl
from jax.experimental.pallas import tpu as pltpu

IN_FEATURES = 28 * 28   # 784
N_CLASSES = 10
OUT_PAD = 128           # lane-dense padded class dimension


def _round_up(x, m):
    return ((x + m - 1) // m) * m


def _net_classic_kernel(x_ref, w1t_ref, w2t_ref, o_ref):
    # x_ref:   (B, 784)        bf16 flattened input
    # w1t_ref: (784, n2_pad)   bf16 fc1 weight, transposed + zero-padded
    # w2t_ref: (n2_pad, 128)   f32  fc2 weight, transposed + zero-padded
    # o_ref:   (B, 128)        f32  log-probabilities (valid in [:, :10])

    # fc1 + ReLU: bf16 MXU matmul with f32 accumulation, elementwise in f32.
    h = jnp.dot(x_ref[...], w1t_ref[...], preferred_element_type=jnp.float32)
    h = jnp.maximum(h, 0.0)

    # fc2 (f32; K and N are both 128-aligned thanks to padding).
    logits = jnp.dot(h, w2t_ref[...], preferred_element_type=jnp.float32)

    # Mask padded class lanes to a large negative so they contribute nothing
    # to the max / logsumexp (exp underflows to exactly 0).
    col = jax.lax.broadcasted_iota(jnp.int32, logits.shape, 1)
    masked = jnp.where(col < N_CLASSES, logits, jnp.float32(-1e30))

    # Numerically-stable log_softmax along the class axis.
    m = jnp.max(masked, axis=-1, keepdims=True)
    shifted = masked - m
    lse = jnp.log(jnp.sum(jnp.exp(shifted), axis=-1, keepdims=True))
    o_ref[...] = (shifted - lse).astype(o_ref.dtype)


def prepare_net_classic_params(w1, w2):
    """One-time parameter prep (transpose + pad + cast), hoisted out of the
    per-call path.

    w1: (n2, 784)  fc1.weight (PyTorch (out, in) convention)
    w2: (10, n2)   fc2.weight
    returns (w1t_pad  (784, n2_pad) bf16,
             w2t_pad  (n2_pad, 128) f32)
    """
    n2 = w1.shape[0]
    assert w1.shape == (n2, IN_FEATURES)
    assert w2.shape == (N_CLASSES, n2)
    n2_pad = max(_round_up(n2, 128), 128)

    w1t_pad = jnp.zeros((IN_FEATURES, n2_pad), jnp.bfloat16)
    w1t_pad = w1t_pad.at[:, :n2].set(jnp.transpose(w1).astype(jnp.bfloat16))

    w2t_pad = jnp.zeros((n2_pad, OUT_PAD), jnp.float32)
    w2t_pad = w2t_pad.at[:n2, :N_CLASSES].set(
        jnp.transpose(w2).astype(jnp.float32))
    return w1t_pad, w2t_pad


def net_classic_forward(x_nchw, w1t_pad, w2t_pad):
    """Forward pass of Net_classic using pre-prepared (padded) weights.

    x_nchw:  (B, 1, 28, 28) float32 (NCHW, like PyTorch)
    w1t_pad: (784, n2_pad)  bfloat16, from prepare_net_classic_params
    w2t_pad: (n2_pad, 128)  float32,  from prepare_net_classic_params
    returns (B, 10) log-probabilities (float32).
    """
    B = x_nchw.shape[0]
    n2_pad = w1t_pad.shape[1]
    assert w1t_pad.shape == (IN_FEATURES, n2_pad)
    assert w2t_pad.shape == (n2_pad, OUT_PAD)

    # torch.flatten(x, 1); bf16 for the fc1 MXU operand.
    x_flat = x_nchw.reshape(B, IN_FEATURES).astype(jnp.bfloat16)

    cost = pl.CostEstimate(
        flops=2 * B * (IN_FEATURES * n2_pad + n2_pad * OUT_PAD),
        transcendentals=B * (OUT_PAD + 1),          # exp per lane + log per row
        bytes_accessed=(x_flat.size * 2 + w1t_pad.size * 2
                        + w2t_pad.size * 4 + B * OUT_PAD * 4),
    )

    # Single-block kernel: no grid, whole arrays resident in VMEM (tiny
    # problem, well under any generation's VMEM budget).
    out_pad = pl.pallas_call(
        _net_classic_kernel,
        out_shape=jax.ShapeDtypeStruct((B, OUT_PAD), jnp.float32),
        in_specs=[
            pl.BlockSpec(memory_space=pltpu.MemorySpace.VMEM),
            pl.BlockSpec(memory_space=pltpu.MemorySpace.VMEM),
            pl.BlockSpec(memory_space=pltpu.MemorySpace.VMEM),
        ],
        out_specs=pl.BlockSpec(memory_space=pltpu.MemorySpace.VMEM),
        cost_estimate=cost,
    )(x_flat, w1t_pad, w2t_pad)

    # TODO(synk): for large B on v7x, tile the batch with grid=(cdiv(B,TB),)
    # and dimension_semantics=("parallel",) to engage both TensorCores.
    return out_pad[:, :N_CLASSES]


def _reference_forward(x_nchw, w1, w2):
    # Pure-JAX reference; fc1 operands routed through bf16 to mirror the
    # kernel's bf16 MXU path (f32 accumulation in both cases).
    x = x_nchw.reshape(x_nchw.shape[0], -1)
    x_b = x.astype(jnp.bfloat16).astype(jnp.float32)
    w1_b = w1.astype(jnp.bfloat16).astype(jnp.float32)
    h = jnp.maximum(x_b @ w1_b.T, 0.0)
    logits = h @ w2.astype(jnp.float32).T
    return jax.nn.log_softmax(logits, axis=1)


if __name__ == "__main__":
    key = jax.random.PRNGKey(0)
    k_x, k_w1, k_w2 = jax.random.split(key, 3)

    B = 8      # small batch
    n2 = 32    # hidden width (module's n2 argument)

    # Deterministic synthetic parameters (PyTorch-Linear-style uniform init).
    bound1 = 1.0 / (IN_FEATURES ** 0.5)
    bound2 = 1.0 / (n2 ** 0.5)
    w1 = jax.random.uniform(k_w1, (n2, IN_FEATURES), jnp.float32,
                            minval=-bound1, maxval=bound1)
    w2 = jax.random.uniform(k_w2, (N_CLASSES, n2), jnp.float32,
                            minval=-bound2, maxval=bound2)

    # MNIST-like input, NCHW.
    x = jax.random.normal(k_x, (B, 1, 28, 28), jnp.float32)

    # One-time parameter prep (transpose / pad / cast).
    w1t_pad, w2t_pad = prepare_net_classic_params(w1, w2)

    out = net_classic_forward(x, w1t_pad, w2t_pad)
    out = jax.block_until_ready(out)

    ref = _reference_forward(x, w1, w2)
    assert out.shape == (B, N_CLASSES)
    assert jnp.allclose(out, ref, atol=2e-3, rtol=2e-3), "mismatch vs reference"

    print("KERNEL_OK")
</pallas_src>

<mosaic_0001>
module attributes {stable_mosaic.version = 11 : i64} {
  func.func @_net_classic_kernel(%arg0: memref<8x784xbf16, #tpu.memory_space<vmem>>, %arg1: memref<784x128xbf16, #tpu.memory_space<vmem>>, %arg2: memref<128x128xf32, #tpu.memory_space<vmem>>, %arg3: memref<8x128xf32, #tpu.memory_space<vmem>>) attributes {dimension_semantics = [], scalar_prefetch = 0 : i64, scratch_operands = 0 : i64, tpu.core_type = #tpu.core_type<tc>} {
    %c0 = arith.constant 0 : index
    %c0_0 = arith.constant 0 : index
    %0 = vector.load %arg0[%c0, %c0_0] : memref<8x784xbf16, #tpu.memory_space<vmem>>, vector<8x784xbf16>
    %c0_1 = arith.constant 0 : index
    %c0_2 = arith.constant 0 : index
    %1 = vector.load %arg1[%c0_1, %c0_2] : memref<784x128xbf16, #tpu.memory_space<vmem>>, vector<784x128xbf16>
    %cst = arith.constant dense<0.000000e+00> : vector<8x128xf32>
    %2 = tpu.matmul %0, %1, %cst {dimension_numbers = #tpu.dot_dimension_numbers<[1], [0], [0], [1], [0, 0, 1, 1], [], []>} : vector<8x784xbf16>, vector<784x128xbf16>, vector<8x128xf32> -> vector<8x128xf32>
    %cst_3 = arith.constant 0.000000e+00 : f32
    %3 = vector.broadcast %cst_3 : f32 to vector<8x128xf32>
    %4 = arith.maximumf %2, %3 : vector<8x128xf32>
    %c0_4 = arith.constant 0 : index
    %c0_5 = arith.constant 0 : index
    %5 = vector.load %arg2[%c0_4, %c0_5] : memref<128x128xf32, #tpu.memory_space<vmem>>, vector<128x128xf32>
    %cst_6 = arith.constant dense<0.000000e+00> : vector<8x128xf32>
    %6 = tpu.matmul %4, %5, %cst_6 {dimension_numbers = #tpu.dot_dimension_numbers<[1], [0], [0], [1], [0, 0, 1, 1], [], []>} : vector<8x128xf32>, vector<128x128xf32>, vector<8x128xf32> -> vector<8x128xf32>
    %7 = tpu.iota {dimensions = array<i32: 1>} : vector<8x128xi32>
    %c10_i32 = arith.constant 10 : i32
    %8 = vector.broadcast %c10_i32 : i32 to vector<8x128xi32>
    %9 = arith.cmpi slt, %7, %8 : vector<8x128xi32>
    %cst_7 = arith.constant -1.000000e+30 : f32
    %10 = vector.broadcast %cst_7 : f32 to vector<8x128xf32>
    %11 = arith.select %9, %6, %10 : vector<8x128xi1>, vector<8x128xf32>
    %cst_8 = arith.constant dense<0xFF800000> : vector<8xf32>
    %12 = vector.multi_reduction <maximumf>, %11, %cst_8 [1] : vector<8x128xf32> to vector<8xf32>
    %13 = vector.shape_cast %12 : vector<8xf32> to vector<8x1xf32>
    %14 = vector.broadcast %13 : vector<8x1xf32> to vector<8x128xf32>
    %15 = arith.subf %11, %14 : vector<8x128xf32>
    %16 = math.exp %15 : vector<8x128xf32>
    %cst_9 = arith.constant dense<0.000000e+00> : vector<8xf32>
    %17 = vector.multi_reduction <add>, %16, %cst_9 [1] : vector<8x128xf32> to vector<8xf32>
    %18 = vector.shape_cast %17 : vector<8xf32> to vector<8x1xf32>
    %19 = math.log %18 : vector<8x1xf32>
    %20 = vector.broadcast %19 : vector<8x1xf32> to vector<8x128xf32>
    %21 = arith.subf %15, %20 : vector<8x128xf32>
    %c0_10 = arith.constant 0 : index
    %c0_11 = arith.constant 0 : index
    %22 = vector.load %arg3[%c0_10, %c0_11] : memref<8x128xf32, #tpu.memory_space<vmem>>, vector<8x128xf32>
    tpu.vector_store %arg3[%c0_10, %c0_11], %21 {strides = array<i32>} : memref<8x128xf32, #tpu.memory_space<vmem>>, vector<8x128xf32>,
    return
  }
}

</mosaic_0001>

<llo_original>
// kernel: tpu_custom_call.1
$region0: #{tpu_custom_call.1}
  #allocation0 [shape = 'u32[]', space=smem, size = 0x4, offset = 0x4, fixed_abs, tag = 'smem constant byte address 0x4 - core index']
  #allocation1 [shape = 'u32[144,128]{1,0:T(1,128)}', space=vmem, size = 0x12000, scoped, tag = 'internal scratch']
  %s0 = inlined_call_operand.hbm [shape: bf16[8,784], index: 0, kind: input, shape index: {}]
  %s1 = inlined_call_operand.hbm [shape: bf16[784,128], index: 1, kind: input, shape index: {}]
  %s2 = inlined_call_operand.hbm [shape: f32[128,128], index: 2, kind: input, shape index: {}]
  %s3 = inlined_call_operand.hbm [shape: f32[8,128], index: 3, kind: output, shape index: {}]
  %s4 = sld [smem:[#allocation0]]
  $region34: #{tpu_custom_call.1} parent=0
    _
  %s6 = ssub.s32 1, %s4
  %s7 = scalar_select 0, %s6, %s4
  $region1: #{tpu_custom_call.1} parent=0
    #allocation2 [shape = 'u8[14336]{0}', space=vmem, size = 0x3800, scoped, tag = 'input window, operand 0, single buffered']
    #allocation3 [shape = 's32[1]{0}', space=sflag, size = 0x4, scoped, tag = 'scoped memory for tpu_custom_call.1']
    #allocation4 [shape = 's32[1]{0}', space=sflag, size = 0x4, scoped, tag = 'scoped memory for tpu_custom_call.1']
    #allocation5 [shape = 'u8[200704]{0}', space=vmem, size = 0x31000, scoped, tag = 'input window, operand 1, single buffered']
    #allocation6 [shape = 's32[1]{0}', space=sflag, size = 0x4, scoped, tag = 'scoped memory for tpu_custom_call.1']
    #allocation7 [shape = 'u8[65536]{0}', space=vmem, size = 0x10000, scoped, tag = 'input window, operand 2, single buffered']
    #allocation8 [shape = 'u8[4096]{0}', space=vmem, size = 0x1000, scoped, tag = 'output window, operand 0, single buffered']
    %8 = vsyncpa [#allocation3], 0
    %9 = vsyncpa [#allocation6], 0
    %10 = vsyncpa [#allocation4], 0
    // Predicated region
    $region2: #{tpu_custom_call.1} parent=1 // pred_check
      _
    $region3: #{tpu_custom_call.1} parent=1 // pred_check_branch
      %12 = sbr.rel (0) target = $region5
    $region4: #{tpu_custom_call.1} parent=1 // pred_region
      %s14 = ssub.s32 448, 448
      %15 = vsyncadd [#allocation3], %s14
      %s17 = sshll.u32 [#allocation2], 4
      %s18 = int_to_ptr.vmem [resolvable:$true] %s17
      %20 = dma.hbm_to_vmem [thread:$0]  %s0, 448, %s18, [#allocation3]
    $region5: #{tpu_custom_call.1} parent=1 // pred_fallthru
      _
    // Predicated region
    $region6: #{tpu_custom_call.1} parent=1 // pred_check
      _
    $region7: #{tpu_custom_call.1} parent=1 // pred_check_branch
      %22 = sbr.rel (0) target = $region9
    $region8: #{tpu_custom_call.1} parent=1 // pred_region
      %s24 = ssub.s32 6272, 6272
      %25 = vsyncadd [#allocation6], %s24
      %s26 = sshll.u32 [#allocation5], 4
      %s27 = int_to_ptr.vmem [resolvable:$true] %s26
      %32 = dma.hbm_to_vmem [thread:$0]  %s1, 6272, %s27, [#allocation6], 64, 64, 4
    $region9: #{tpu_custom_call.1} parent=1 // pred_fallthru
      _
    // Predicated region
    $region10: #{tpu_custom_call.1} parent=1 // pred_check
      _
    $region11: #{tpu_custom_call.1} parent=1 // pred_check_branch
      %34 = sbr.rel (0) target = $region13
    $region12: #{tpu_custom_call.1} parent=1 // pred_region
      %s36 = ssub.s32 2048, 2048
      %37 = vsyncadd [#allocation6], %s36
      %s38 = sshll.u32 [#allocation7], 4
      %s39 = int_to_ptr.vmem [resolvable:$true] %s38
      %44 = dma.hbm_to_vmem [thread:$0]  %s2, 2048, %s39, [#allocation6], 128, 128, 8
    $region13: #{tpu_custom_call.1} parent=1 // pred_fallthru
      _
    // Predicated region
    $region14: #{tpu_custom_call.1} parent=1 // pred_check
      _
    $region15: #{tpu_custom_call.1} parent=1 // pred_check_branch
      %46 = sbr.rel (0) target = $region17
    $region16: #{tpu_custom_call.1} parent=1 // pred_region
      %47 = dma.done [#allocation3], 448
    $region17: #{tpu_custom_call.1} parent=1 // pred_fallthru
      _
    // Predicated region
    $region18: #{tpu_custom_call.1} parent=1 // pred_check
      _
    $region19: #{tpu_custom_call.1} parent=1 // pred_check_branch
      %49 = sbr.rel (0) target = $region21
    $region20: #{tpu_custom_call.1} parent=1 // pred_region
      %50 = dma.done [#allocation6], 6272
    $region21: #{tpu_custom_call.1} parent=1 // pred_fallthru
      _
    // Predicated region
    $region22: #{tpu_custom_call.1} parent=1 // pred_check
      _
    $region23: #{tpu_custom_call.1} parent=1 // pred_check_branch
      %52 = sbr.rel (0) target = $region25
    $region24: #{tpu_custom_call.1} parent=1 // pred_region
      %53 = dma.done [#allocation6], 2048
    $region25: #{tpu_custom_call.1} parent=1 // pred_fallthru
      _
    %v55 = vld [vmem:[#allocation2] sm:$0xff]
    %v56 = vld [vmem:[#allocation2 + $0x8] sm:$0xff]
    %v57 = vld [vmem:[#allocation2 + $0x10] sm:$0xff]
    %v58 = vld [vmem:[#allocation2 + $0x18] sm:$0xf]
    %v59 = vld [vmem:[#allocation5] sm:$0xf]
    %v60 = vld [vmem:[#allocation5 + $0x4] sm:$0xf]
    %v61 = vld [vmem:[#allocation5 + $0x8] sm:$0xf]
    %v62 = vld [vmem:[#allocation5 + $0xc] sm:$0xf]
    %v63 = vld [vmem:[#allocation5 + $0x10] sm:$0xf]
    %v64 = vld [vmem:[#allocation5 + $0x14] sm:$0xf]
    %v65 = vld [vmem:[#allocation5 + $0x18] sm:$0xf]
    %v66 = vld [vmem:[#allocation5 + $0x1c] sm:$0xf]
    %v67 = vld [vmem:[#allocation5 + $0x20] sm:$0xf]
    %v68 = vld [vmem:[#allocation5 + $0x24] sm:$0xf]
    %v69 = vld [vmem:[#allocation5 + $0x28] sm:$0xf]
    %v70 = vld [vmem:[#allocation5 + $0x2c] sm:$0xf]
    %v71 = vld [vmem:[#allocation5 + $0x30] sm:$0xf]
    %v72 = vld [vmem:[#allocation5 + $0x34] sm:$0xf]
    %v73 = vld [vmem:[#allocation5 + $0x38] sm:$0xf]
    %v74 = vld [vmem:[#allocation5 + $0x3c] sm:$0xf]
    %v75 = vld [vmem:[#allocation5 + $0x40] sm:$0xf]
    %v76 = vld [vmem:[#allocation5 + $0x44] sm:$0xf]
    %v77 = vld [vmem:[#allocation5 + $0x48] sm:$0xf]
    %v78 = vld [vmem:[#allocation5 + $0x4c] sm:$0xf]
    %v79 = vld [vmem:[#allocation5 + $0x50] sm:$0xf]
    %v80 = vld [vmem:[#allocation5 + $0x54] sm:$0xf]
    %v81 = vld [vmem:[#allocation5 + $0x58] sm:$0xf]
    %v82 = vld [vmem:[#allocation5 + $0x5c] sm:$0xf]
    %v83 = vld [vmem:[#allocation5 + $0x60] sm:$0xf]
    %v84 = vld [vmem:[#allocation5 + $0x64] sm:$0xf]
    %v85 = vld [vmem:[#allocation5 + $0x68] sm:$0xf]
    %v86 = vld [vmem:[#allocation5 + $0x6c] sm:$0xf]
    %v87 = vld [vmem:[#allocation5 + $0x70] sm:$0xf]
    %v88 = vld [vmem:[#allocation5 + $0x74] sm:$0xf]
    %v89 = vld [vmem:[#allocation5 + $0x78] sm:$0xf]
    %v90 = vld [vmem:[#allocation5 + $0x7c] sm:$0xf]
    %v91 = vld [vmem:[#allocation5 + $0x80] sm:$0xf]
    %v92 = vld [vmem:[#allocation5 + $0x84] sm:$0xf]
    %v93 = vld [vmem:[#allocation5 + $0x88] sm:$0xf]
    %v94 = vld [vmem:[#allocation5 + $0x8c] sm:$0xf]
    %v95 = vld [vmem:[#allocation5 + $0x90] sm:$0xf]
    %v96 = vld [vmem:[#allocation5 + $0x94] sm:$0xf]
    %v97 = vld [vmem:[#allocation5 + $0x98] sm:$0xf]
    %v98 = vld [vmem:[#allocation5 + $0x9c] sm:$0xf]
    %v99 = vld [vmem:[#allocation5 + $0xa0] sm:$0xf]
    %v100 = vld [vmem:[#allocation5 + $0xa4] sm:$0xf]
    %v101 = vld [vmem:[#allocation5 + $0xa8] sm:$0xf]
    %v102 = vld [vmem:[#allocation5 + $0xac] sm:$0xf]
    %v103 = vld [vmem:[#allocation5 + $0xb0] sm:$0xf]
    %v104 = vld [vmem:[#allocation5 + $0xb4] sm:$0xf]
    %v105 = vld [vmem:[#allocation5 + $0xb8] sm:$0xf]
    %v106 = vld [vmem:[#allocation5 + $0xbc] sm:$0xf]
    %v107 = vld [vmem:[#allocation5 + $0xc0] sm:$0xf]
    %v108 = vld [vmem:[#allocation5 + $0xc4] sm:$0xf]
    %v109 = vld [vmem:[#allocation5 + $0xc8] sm:$0xf]
    %v110 = vld [vmem:[#allocation5 + $0xcc] sm:$0xf]
    %v111 = vld [vmem:[#allocation5 + $0xd0] sm:$0xf]
    %v112 = vld [vmem:[#allocation5 + $0xd4] sm:$0xf]
    %v113 = vld [vmem:[#allocation5 + $0xd8] sm:$0xf]
    %v114 = vld [vmem:[#allocation5 + $0xdc] sm:$0xf]
    %v115 = vld [vmem:[#allocation5 + $0xe0] sm:$0xf]
    %v116 = vld [vmem:[#allocation5 + $0xe4] sm:$0xf]
    %v117 = vld [vmem:[#allocation5 + $0xe8] sm:$0xf]
    %v118 = vld [vmem:[#allocation5 + $0xec] sm:$0xf]
    %v119 = vld [vmem:[#allocation5 + $0xf0] sm:$0xf]
    %v120 = vld [vmem:[#allocation5 + $0xf4] sm:$0xf]
    %v121 = vld [vmem:[#allocation5 + $0xf8] sm:$0xf]
    %v122 = vld [vmem:[#allocation5 + $0xfc] sm:$0xf]
    %v123 = vld [vmem:[#allocation5 + $0x100] sm:$0xf]
    %v124 = vld [vmem:[#allocation5 + $0x104] sm:$0xf]
    %v125 = vld [vmem:[#allocation5 + $0x108] sm:$0xf]
    %v126 = vld [vmem:[#allocation5 + $0x10c] sm:$0xf]
    %v127 = vld [vmem:[#allocation5 + $0x110] sm:$0xf]
    %v128 = vld [vmem:[#allocation5 + $0x114] sm:$0xf]
    %v129 = vld [vmem:[#allocation5 + $0x118] sm:$0xf]
    %v130 = vld [vmem:[#allocation5 + $0x11c] sm:$0xf]
    %v131 = vld [vmem:[#allocation5 + $0x120] sm:$0xf]
    %v132 = vld [vmem:[#allocation5 + $0x124] sm:$0xf]
    %v133 = vld [vmem:[#allocation5 + $0x128] sm:$0xf]
    %v134 = vld [vmem:[#allocation5 + $0x12c] sm:$0xf]
    %v135 = vld [vmem:[#allocation5 + $0x130] sm:$0xf]
    %v136 = vld [vmem:[#allocation5 + $0x134] sm:$0xf]
    %v137 = vld [vmem:[#allocation5 + $0x138] sm:$0xf]
    %v138 = vld [vmem:[#allocation5 + $0x13c] sm:$0xf]
    %v139 = vld [vmem:[#allocation5 + $0x140] sm:$0xf]
    %v140 = vld [vmem:[#allocation5 + $0x144] sm:$0xf]
    %v141 = vld [vmem:[#allocation5 + $0x148] sm:$0xf]
    %v142 = vld [vmem:[#allocation5 + $0x14c] sm:$0xf]
    %v143 = vld [vmem:[#allocation5 + $0x150] sm:$0xf]
    %v144 = vld [vmem:[#allocation5 + $0x154] sm:$0xf]
    %v145 = vld [vmem:[#allocation5 + $0x158] sm:$0xf]
    %v146 = vld [vmem:[#allocation5 + $0x15c] sm:$0xf]
    %v147 = vld [vmem:[#allocation5 + $0x160] sm:$0xf]
    %v148 = vld [vmem:[#allocation5 + $0x164] sm:$0xf]
    %v149 = vld [vmem:[#allocation5 + $0x168] sm:$0xf]
    %v150 = vld [vmem:[#allocation5 + $0x16c] sm:$0xf]
    %v151 = vld [vmem:[#allocation5 + $0x170] sm:$0xf]
    %v152 = vld [vmem:[#allocation5 + $0x174] sm:$0xf]
    %v153 = vld [vmem:[#allocation5 + $0x178] sm:$0xf]
    %v154 = vld [vmem:[#allocation5 + $0x17c] sm:$0xf]
    %v155 = vld [vmem:[#allocation5 + $0x180] sm:$0xf]
    %v156 = vld [vmem:[#allocation5 + $0x184] sm:$0xf]
    %v161 = vunpack.c.l.b16 %v55
    %v162 = vunpack.c.h.b16 %v55
    %v163 = vunpack.c.l.b16 %v56
    %v164 = vunpack.c.h.b16 %v56
    %v165 = vunpack.c.l.b16 %v57
    %v166 = vunpack.c.h.b16 %v57
    %v167 = vunpack.c.l.b16 %v58
    %v168 = vpack.c.b16 %v161, %v161
    %v169 = vpack.c.b16 %v162, %v162
    %v170 = vpack.c.b16 %v163, %v163
    %v171 = vpack.c.b16 %v164, %v164
    %v172 = vpack.c.b16 %v165, %v165
    %v173 = vpack.c.b16 %v166, %v166
    %v174 = vpack.c.b16 %v167, %v167
    %v279 = vunpack.c.l.b16 %v59
    %v280 = vunpack.c.l.b16 %v60
    %v281 = vunpack.c.l.b16 %v61
    %v282 = vunpack.c.l.b16 %v62
    %v283 = vunpack.c.l.b16 %v63
    %v284 = vunpack.c.l.b16 %v64
    %v285 = vunpack.c.l.b16 %v65
    %v286 = vunpack.c.l.b16 %v66
    %v287 = vunpack.c.l.b16 %v67
    %v288 = vunpack.c.l.b16 %v68
    %v289 = vunpack.c.l.b16 %v69
    %v290 = vunpack.c.l.b16 %v70
    %v291 = vunpack.c.l.b16 %v71
    %v292 = vunpack.c.l.b16 %v72
    %v293 = vunpack.c.l.b16 %v73
    %v294 = vunpack.c.l.b16 %v74
    %v295 = vunpack.c.l.b16 %v75
    %v296 = vunpack.c.l.b16 %v76
    %v297 = vunpack.c.l.b16 %v77
    %v298 = vunpack.c.l.b16 %v78
    %v299 = vunpack.c.l.b16 %v79
    %v300 = vunpack.c.l.b16 %v80
    %v301 = vunpack.c.l.b16 %v81
    %v302 = vunpack.c.l.b16 %v82
    %v303 = vunpack.c.l.b16 %v83
    %v304 = vunpack.c.l.b16 %v84
    %v305 = vunpack.c.l.b16 %v85
    %v306 = vunpack.c.l.b16 %v86
    %v307 = vunpack.c.l.b16 %v87
    %v308 = vunpack.c.l.b16 %v88
    %v309 = vunpack.c.l.b16 %v89
    %v310 = vunpack.c.l.b16 %v90
    %v311 = vunpack.c.l.b16 %v91
    %v312 = vunpack.c.l.b16 %v92
    %v313 = vunpack.c.l.b16 %v93
    %v314 = vunpack.c.l.b16 %v94
    %v315 = vunpack.c.l.b16 %v95
    %v316 = vunpack.c.l.b16 %v96
    %v317 = vunpack.c.l.b16 %v97
    %v318 = vunpack.c.l.b16 %v98
    %v319 = vunpack.c.l.b16 %v99
    %v320 = vunpack.c.l.b16 %v100
    %v321 = vunpack.c.l.b16 %v101
    %v322 = vunpack.c.l.b16 %v102
    %v323 = vunpack.c.l.b16 %v103
    %v324 = vunpack.c.l.b16 %v104
    %v325 = vunpack.c.l.b16 %v105
    %v326 = vunpack.c.l.b16 %v106
    %v327 = vunpack.c.l.b16 %v107
    %v328 = vunpack.c.l.b16 %v108
    %v329 = vunpack.c.l.b16 %v109
    %v330 = vunpack.c.l.b16 %v110
    %v331 = vunpack.c.l.b16 %v111
    %v332 = vunpack.c.l.b16 %v112
    %v333 = vunpack.c.l.b16 %v113
    %v334 = vunpack.c.l.b16 %v114
    %v335 = vunpack.c.l.b16 %v115
    %v336 = vunpack.c.l.b16 %v116
    %v337 = vunpack.c.l.b16 %v117
    %v338 = vunpack.c.l.b16 %v118
    %v339 = vunpack.c.l.b16 %v119
    %v340 = vunpack.c.l.b16 %v120
    %v341 = vunpack.c.l.b16 %v121
    %v342 = vunpack.c.l.b16 %v122
    %v343 = vunpack.c.l.b16 %v123
    %v344 = vunpack.c.l.b16 %v124
    %v345 = vunpack.c.l.b16 %v125
    %v346 = vunpack.c.l.b16 %v126
    %v347 = vunpack.c.l.b16 %v127
    %v348 = vunpack.c.l.b16 %v128
    %v349 = vunpack.c.l.b16 %v129
    %v350 = vunpack.c.l.b16 %v130
    %v351 = vunpack.c.l.b16 %v131
    %v352 = vunpack.c.l.b16 %v132
    %v353 = vunpack.c.l.b16 %v133
    %v354 = vunpack.c.l.b16 %v134
    %v355 = vunpack.c.l.b16 %v135
    %v356 = vunpack.c.l.b16 %v136
    %v357 = vunpack.c.l.b16 %v137
    %v358 = vunpack.c.l.b16 %v138
    %v359 = vunpack.c.l.b16 %v139
    %v360 = vunpack.c.l.b16 %v140
    %v361 = vunpack.c.l.b16 %v141
    %v362 = vunpack.c.l.b16 %v142
    %v363 = vunpack.c.l.b16 %v143
    %v364 = vunpack.c.l.b16 %v144
    %v365 = vunpack.c.l.b16 %v145
    %v366 = vunpack.c.l.b16 %v146
    %v367 = vunpack.c.l.b16 %v147
    %v368 = vunpack.c.l.b16 %v148
    %v369 = vunpack.c.l.b16 %v149
    %v370 = vunpack.c.l.b16 %v150
    %v371 = vunpack.c.l.b16 %v151
    %v372 = vunpack.c.l.b16 %v152
    %v373 = vunpack.c.l.b16 %v153
    %v374 = vunpack.c.l.b16 %v154
    %v375 = vunpack.c.l.b16 %v155
    %v376 = vunpack.c.l.b16 %v156
    %v377 = vpack.c.b16 %v280, %v279
    %v378 = vpack.c.b16 %v282, %v281
    %v379 = vpack.c.b16 %v284, %v283
    %v380 = vpack.c.b16 %v286, %v285
    %v381 = vpack.c.b16 %v288, %v287
    %v382 = vpack.c.b16 %v290, %v289
    %v383 = vpack.c.b16 %v292, %v291
    %v384 = vpack.c.b16 %v294, %v293
    %v385 = vpack.c.b16 %v296, %v295
    %v386 = vpack.c.b16 %v298, %v297
    %v387 = vpack.c.b16 %v300, %v299
    %v388 = vpack.c.b16 %v302, %v301
    %v389 = vpack.c.b16 %v304, %v303
    %v390 = vpack.c.b16 %v306, %v305
    %v391 = vpack.c.b16 %v308, %v307
    %v392 = vpack.c.b16 %v310, %v309
    %v393 = vpack.c.b16 %v312, %v311
    %v394 = vpack.c.b16 %v314, %v313
    %v395 = vpack.c.b16 %v316, %v315
    %v396 = vpack.c.b16 %v318, %v317
    %v397 = vpack.c.b16 %v320, %v319
    %v398 = vpack.c.b16 %v322, %v321
    %v399 = vpack.c.b16 %v324, %v323
    %v400 = vpack.c.b16 %v326, %v325
    %v401 = vpack.c.b16 %v328, %v327
    %v402 = vpack.c.b16 %v330, %v329
    %v403 = vpack.c.b16 %v332, %v331
    %v404 = vpack.c.b16 %v334, %v333
    %v405 = vpack.c.b16 %v336, %v335
    %v406 = vpack.c.b16 %v338, %v337
    %v407 = vpack.c.b16 %v340, %v339
    %v408 = vpack.c.b16 %v342, %v341
    %v409 = vpack.c.b16 %v344, %v343
    %v410 = vpack.c.b16 %v346, %v345
    %v411 = vpack.c.b16 %v348, %v347
    %v412 = vpack.c.b16 %v350, %v349
    %v413 = vpack.c.b16 %v352, %v351
    %v414 = vpack.c.b16 %v354, %v353
    %v415 = vpack.c.b16 %v356, %v355
    %v416 = vpack.c.b16 %v358, %v357
    %v417 = vpack.c.b16 %v360, %v359
    %v418 = vpack.c.b16 %v362, %v361
    %v419 = vpack.c.b16 %v364, %v363
    %v420 = vpack.c.b16 %v366, %v365
    %v421 = vpack.c.b16 %v368, %v367
    %v422 = vpack.c.b16 %v370, %v369
    %v423 = vpack.c.b16 %v372, %v371
    %v424 = vpack.c.b16 %v374, %v373
    %v425 = vpack.c.b16 %v376, %v375
    %vm475 = vcmask 130048
    %v477 = vsel %vm475, %v174, 0
    %479 = vmatprep.subr.bf16.mxu0 0
    %480 = vmatpush1.bf16.msra.mxu0 %v377
    %481 = vmatprep.subr.bf16.mxu0 0
    %482 = vmatpush1.bf16.msra.mxu0 %v378
    %483 = vmatprep.subr.bf16.mxu0 0
    %484 = vmatpush1.bf16.msra.mxu0 %v379
    %485 = vmatprep.subr.bf16.mxu0 0
    %486 = vmatpush1.bf16.msra.mxu0 %v380
    %487 = vmatprep.subr.bf16.mxu0 0
    %488 = vmatpush1.bf16.msra.mxu0 %v381
    %489 = vmatprep.subr.bf16.mxu0 0
    %490 = vmatpush1.bf16.msra.mxu0 %v382
    %491 = vmatprep.subr.bf16.mxu0 0
    %492 = vmatpush1.bf16.msra.mxu0 %v383
    %493 = vmatprep.subr.bf16.mxu0 0
    %494 = vmatpush1.bf16.msra.mxu0 %v384
    %495 = vmatprep.subr.bf16.mxu0 0
    %496 = vmatpush1.bf16.msra.mxu0 %v385
    %497 = vmatprep.subr.bf16.mxu0 0
    %498 = vmatpush1.bf16.msra.mxu0 %v386
    %499 = vmatprep.subr.bf16.mxu0 0
    %500 = vmatpush1.bf16.msra.mxu0 %v387
    %501 = vmatprep.subr.bf16.mxu0 0
    %502 = vmatpush1.bf16.msra.mxu0 %v388
    %503 = vmatprep.subr.bf16.mxu0 0
    %504 = vmatpush1.bf16.msra.mxu0 %v389
    %505 = vmatprep.subr.bf16.mxu0 0
    %506 = vmatpush1.bf16.msra.mxu0 %v390
    %507 = vmatprep.subr.bf16.mxu0 0
    %508 = vmatpush1.bf16.msra.mxu0 %v391
    %509 = vmatprep.subr.bf16.mxu0 0
    %510 = vmatpush1.bf16.msra.mxu0 %v392
    %511 = vmatprep.mubr.bf16.mxu0 %v169
    %512 = vmatmul.mubr.bf16.gmra.mrb[0].mxu0 %v168
    %v513 = vpop.f32.mrb[0].mxu0
    %v514 = vadd.f32 0.0, %v513
    %v515 = vpop.f32.mrb[0].mxu0
    %v516 = vpop.f32.mrb[0].mxu0
    %v517 = vpop.f32.mrb[0].mxu0
    %518 = vdwg.mxu0
    %519 = vmatprep.subr.bf16.mxu0 0
    %520 = vmatpush1.bf16.msra.mxu0 %v393
    %521 = vmatprep.subr.bf16.mxu0 0
    %522 = vmatpush1.bf16.msra.mxu0 %v394
    %523 = vmatprep.subr.bf16.mxu0 0
    %524 = vmatpush1.bf16.msra.mxu0 %v395
    %525 = vmatprep.subr.bf16.mxu0 0
    %526 = vmatpush1.bf16.msra.mxu0 %v396
    %527 = vmatprep.subr.bf16.mxu0 0
    %528 = vmatpush1.bf16.msra.mxu0 %v397
    %529 = vmatprep.subr.bf16.mxu0 0
    %530 = vmatpush1.bf16.msra.mxu0 %v398
    %531 = vmatprep.subr.bf16.mxu0 0
    %532 = vmatpush1.bf16.msra.mxu0 %v399
    %533 = vmatprep.subr.bf16.mxu0 0
    %534 = vmatpush1.bf16.msra.mxu0 %v400
    %535 = vmatprep.subr.bf16.mxu0 0
    %536 = vmatpush1.bf16.msra.mxu0 %v401
    %537 = vmatprep.subr.bf16.mxu0 0
    %538 = vmatpush1.bf16.msra.mxu0 %v402
    %539 = vmatprep.subr.bf16.mxu0 0
    %540 = vmatpush1.bf16.msra.mxu0 %v403
    %541 = vmatprep.subr.bf16.mxu0 0
    %542 = vmatpush1.bf16.msra.mxu0 %v404
    %543 = vmatprep.subr.bf16.mxu0 0
    %544 = vmatpush1.bf16.msra.mxu0 %v405
    %545 = vmatprep.subr.bf16.mxu0 0
    %546 = vmatpush1.bf16.msra.mxu0 %v406
    %547 = vmatprep.subr.bf16.mxu0 0
    %548 = vmatpush1.bf16.msra.mxu0 %v407
    %549 = vmatprep.subr.bf16.mxu0 0
    %550 = vmatpush1.bf16.msra.mxu0 %v408
    %551 = vmatprep.mubr.bf16.mxu0 %v171
    %552 = vmatmul.mubr.bf16.gmra.mrb[0].mxu0 %v170
    %v553 = vpop.f32.mrb[0].mxu0
    %v554 = vadd.f32 %v514, %v553
    %v555 = vpop.f32.mrb[0].mxu0
    %v556 = vpop.f32.mrb[0].mxu0
    %v557 = vpop.f32.mrb[0].mxu0
    %558 = vdwg.mxu0
    %559 = vmatprep.subr.bf16.mxu0 0
    %560 = vmatpush1.bf16.msra.mxu0 %v409
    %561 = vmatprep.subr.bf16.mxu0 0
    %562 = vmatpush1.bf16.msra.mxu0 %v410
    %563 = vmatprep.subr.bf16.mxu0 0
    %564 = vmatpush1.bf16.msra.mxu0 %v411
    %565 = vmatprep.subr.bf16.mxu0 0
    %566 = vmatpush1.bf16.msra.mxu0 %v412
    %567 = vmatprep.subr.bf16.mxu0 0
    %568 = vmatpush1.bf16.msra.mxu0 %v413
    %569 = vmatprep.subr.bf16.mxu0 0
    %570 = vmatpush1.bf16.msra.mxu0 %v414
    %571 = vmatprep.subr.bf16.mxu0 0
    %572 = vmatpush1.bf16.msra.mxu0 %v415
    %573 = vmatprep.subr.bf16.mxu0 0
    %574 = vmatpush1.bf16.msra.mxu0 %v416
    %575 = vmatprep.subr.bf16.mxu0 0
    %576 = vmatpush1.bf16.msra.mxu0 %v417
    %577 = vmatprep.subr.bf16.mxu0 0
    %578 = vmatpush1.bf16.msra.mxu0 %v418
    %579 = vmatprep.subr.bf16.mxu0 0
    %580 = vmatpush1.bf16.msra.mxu0 %v419
    %581 = vmatprep.subr.bf16.mxu0 0
    %582 = vmatpush1.bf16.msra.mxu0 %v420
    %583 = vmatprep.subr.bf16.mxu0 0
    %584 = vmatpush1.bf16.msra.mxu0 %v421
    %585 = vmatprep.subr.bf16.mxu0 0
    %586 = vmatpush1.bf16.msra.mxu0 %v422
    %587 = vmatprep.subr.bf16.mxu0 0
    %588 = vmatpush1.bf16.msra.mxu0 %v423
    %589 = vmatprep.subr.bf16.mxu0 0
    %590 = vmatpush1.bf16.msra.mxu0 %v424
    %591 = vmatprep.mubr.bf16.mxu0 %v173
    %592 = vmatmul.mubr.bf16.gmra.mrb[0].mxu0 %v172
    %v593 = vpop.f32.mrb[0].mxu0
    %v594 = vadd.f32 %v554, %v593
    %v595 = vpop.f32.mrb[0].mxu0
    %v596 = vpop.f32.mrb[0].mxu0
    %v597 = vpop.f32.mrb[0].mxu0
    %598 = vdwg.mxu0
    %599 = vmatprep.subr.bf16.mxu0 0
    %600 = vmatpush1.bf16.msra.mxu0 %v425
    %601 = vmatprep.subr.bf16.mxu0 0
    %602 = vmatpush1.bf16.msra.mxu0 0
    %603 = vmatprep.subr.bf16.mxu0 0
    %604 = vmatpush1.bf16.msra.mxu0 0
    %605 = vmatprep.subr.bf16.mxu0 0
    %606 = vmatpush1.bf16.msra.mxu0 0
    %607 = vmatprep.subr.bf16.mxu0 0
    %608 = vmatpush1.bf16.msra.mxu0 0
    %609 = vmatprep.subr.bf16.mxu0 0
    %610 = vmatpush1.bf16.msra.mxu0 0
    %611 = vmatprep.subr.bf16.mxu0 0
    %612 = vmatpush1.bf16.msra.mxu0 0
    %613 = vmatprep.subr.bf16.mxu0 0
    %614 = vmatpush1.bf16.msra.mxu0 0
    %615 = vmatprep.subr.bf16.mxu0 0
    %616 = vmatpush1.bf16.msra.mxu0 0
    %617 = vmatprep.subr.bf16.mxu0 0
    %618 = vmatpush1.bf16.msra.mxu0 0
    %619 = vmatprep.subr.bf16.mxu0 0
    %620 = vmatpush1.bf16.msra.mxu0 0
    %621 = vmatprep.subr.bf16.mxu0 0
    %622 = vmatpush1.bf16.msra.mxu0 0
    %623 = vmatprep.subr.bf16.mxu0 0
    %624 = vmatpush1.bf16.msra.mxu0 0
    %625 = vmatprep.subr.bf16.mxu0 0
    %626 = vmatpush1.bf16.msra.mxu0 0
    %627 = vmatprep.subr.bf16.mxu0 0
    %628 = vmatpush1.bf16.msra.mxu0 0
    %629 = vmatprep.subr.bf16.mxu0 0
    %630 = vmatpush1.bf16.msra.mxu0 0
    %631 = vmatprep.mubr.bf16.mxu0 0
    %632 = vmatmul.mubr.bf16.gmra.mrb[0].mxu0 %v477
    %v633 = vpop.f32.mrb[0].mxu0
    %v634 = vadd.f32 %v594, %v633
    %v635 = vpop.f32.mrb[0].mxu0
    %v636 = vpop.f32.mrb[0].mxu0
    %v637 = vpop.f32.mrb[0].mxu0
    %638 = vdwg.mxu0
    %v639 = vmax.f32 %v634, 0.0
    %v640 = vld [vmem:[#allocation7] sm:$0xff]
    %v641 = vld [vmem:[#allocation7 + $0x8] sm:$0xff]
    %v642 = vld [vmem:[#allocation7 + $0x10] sm:$0xff]
    %v643 = vld [vmem:[#allocation7 + $0x18] sm:$0xff]
    %v644 = vld [vmem:[#allocation7 + $0x20] sm:$0xff]
    %v645 = vld [vmem:[#allocation7 + $0x28] sm:$0xff]
    %v646 = vld [vmem:[#allocation7 + $0x30] sm:$0xff]
    %v647 = vld [vmem:[#allocation7 + $0x38] sm:$0xff]
    %v648 = vld [vmem:[#allocation7 + $0x40] sm:$0xff]
    %v649 = vld [vmem:[#allocation7 + $0x48] sm:$0xff]
    %v650 = vld [vmem:[#allocation7 + $0x50] sm:$0xff]
    %v651 = vld [vmem:[#allocation7 + $0x58] sm:$0xff]
    %v652 = vld [vmem:[#allocation7 + $0x60] sm:$0xff]
    %v653 = vld [vmem:[#allocation7 + $0x68] sm:$0xff]
    %v654 = vld [vmem:[#allocation7 + $0x70] sm:$0xff]
    %v655 = vld [vmem:[#allocation7 + $0x78] sm:$0xff]
    %656 = vmatprep.subr.mxu0 0.0
    %657 = vmatpush1.msra.mxu0 %v640
    %658 = vmatprep.subr.mxu0 0.0
    %659 = vmatpush1.msra.mxu0 %v641
    %660 = vmatprep.subr.mxu0 0.0
    %661 = vmatpush1.msra.mxu0 %v642
    %662 = vmatprep.subr.mxu0 0.0
    %663 = vmatpush1.msra.mxu0 %v643
    %664 = vmatprep.subr.mxu0 0.0
    %665 = vmatpush1.msra.mxu0 %v644
    %666 = vmatprep.subr.mxu0 0.0
    %667 = vmatpush1.msra.mxu0 %v645
    %668 = vmatprep.subr.mxu0 0.0
    %669 = vmatpush1.msra.mxu0 %v646
    %670 = vmatprep.subr.mxu0 0.0
    %671 = vmatpush1.msra.mxu0 %v647
    %672 = vmatprep.subr.mxu0 0.0
    %673 = vmatpush1.msra.mxu0 %v648
    %674 = vmatprep.subr.mxu0 0.0
    %675 = vmatpush1.msra.mxu0 %v649
    %676 = vmatprep.subr.mxu0 0.0
    %677 = vmatpush1.msra.mxu0 %v650
    %678 = vmatprep.subr.mxu0 0.0
    %679 = vmatpush1.msra.mxu0 %v651
    %680 = vmatprep.subr.mxu0 0.0
    %681 = vmatpush1.msra.mxu0 %v652
    %682 = vmatprep.subr.mxu0 0.0
    %683 = vmatpush1.msra.mxu0 %v653
    %684 = vmatprep.subr.mxu0 0.0
    %685 = vmatpush1.msra.mxu0 %v654
    %686 = vmatprep.subr.mxu0 0.0
    %687 = vmatpush1.msra.mxu0 %v655
    %688 = vmatprep.subr.mxu0 0.0
    %689 = vmatpush1.msra.mxu0 0.0
    %690 = vmatprep.subr.mxu0 0.0
    %691 = vmatpush1.msra.mxu0 0.0
    %692 = vmatprep.subr.mxu0 0.0
    %693 = vmatpush1.msra.mxu0 0.0
    %694 = vmatprep.subr.mxu0 0.0
    %695 = vmatpush1.msra.mxu0 0.0
    %696 = vmatprep.subr.mxu0 0.0
    %697 = vmatpush1.msra.mxu0 0.0
    %698 = vmatprep.subr.mxu0 0.0
    %699 = vmatpush1.msra.mxu0 0.0
    %700 = vmatprep.subr.mxu0 0.0
    %701 = vmatpush1.msra.mxu0 0.0
    %702 = vmatprep.subr.mxu0 0.0
    %703 = vmatpush1.msra.mxu0 0.0
    %704 = vmatprep.subr.mxu0 0.0
    %705 = vmatpush1.msra.mxu0 0.0
    %706 = vmatprep.subr.mxu0 0.0
    %707 = vmatpush1.msra.mxu0 0.0
    %708 = vmatprep.subr.mxu0 0.0
    %709 = vmatpush1.msra.mxu0 0.0
    %710 = vmatprep.subr.mxu0 0.0
    %711 = vmatpush1.msra.mxu0 0.0
    %712 = vmatprep.subr.mxu0 0.0
    %713 = vmatpush1.msra.mxu0 0.0
    %714 = vmatprep.subr.mxu0 0.0
    %715 = vmatpush1.msra.mxu0 0.0
    %716 = vmatprep.subr.mxu0 0.0
    %717 = vmatpush1.msra.mxu0 0.0
    %718 = vmatprep.subr.mxu0 0.0
    %719 = vmatpush1.msra.mxu0 0.0
    %720 = vmatprep.mubr.f32.mxu0 0.0
    %721 = vmatmul.mubr.f32.gmra.mrb[0].mxu0 %v639
    %v722 = vpop.f32.mrb[0].mxu0
    %v723 = vadd.f32 0.0, %v722
    %v724 = vpop.f32.mrb[0].mxu0
    %725 = vdwg.mxu0
    %v726 = vlaneseq
    %v727 = vand.u32 %v726, 127
    %vm728 = vcmp.lt.s32.totalorder %v727, 10
    %v729 = vsel %vm728, %v723, -1e+30
    %730 = vmax.xlane.f32.xlu0 %v729
    %v731 = vpop.xlane.xlu0 %730
    %v732 = vsub.f32 %v729, %v731
    %v733 = vmul.f32 %v732, 1.442695
    %v734 = vpow.pop %v733
    %735 = vadd.xlane.f32.xlu0 %v734
    %v736 = vpop.xlane.xlu0 %735
    %v737 = vlog2.pop %v736
    %v738 = vmul.f32 %v737, 0.6931472
    %v739 = vsub.f32 %v732, %v738
    %740 = vst [vmem:[#allocation8] sm:$0xff] %v739
    // Predicated region
    $region26: #{tpu_custom_call.1} parent=1 // pred_check
      _
    $region27: #{tpu_custom_call.1} parent=1 // pred_check_branch
      %742 = sbr.rel (0) target = $region29
    $region28: #{tpu_custom_call.1} parent=1 // pred_region
      %s744 = ssub.s32 128, 128
      %745 = vsyncadd [#allocation4], %s744
      %s747 = sshll.u32 [#allocation8], 4
      %s748 = int_to_ptr.vmem [resolvable:$true] %s747
      %750 = dma.vmem_to_hbm [thread:$0]  %s748, 128, %s3, [#allocation4]
    $region29: #{tpu_custom_call.1} parent=1 // pred_fallthru
      _
    // Predicated region
    $region30: #{tpu_custom_call.1} parent=1 // pred_check
      _
    $region31: #{tpu_custom_call.1} parent=1 // pred_check_branch
      %752 = sbr.rel (0) target = $region33
    $region32: #{tpu_custom_call.1} parent=1 // pred_region
      %753 = dma.done [#allocation4], 128
    $region33: #{tpu_custom_call.1} parent=1 // pred_fallthru
      _
    %754 = vsyncpa [#allocation3], 1
    %755 = vsyncpa [#allocation6], 1
    %756 = vsyncpa [#allocation4], 1

</llo_original>
